<compile_context>
chip_gen: v7x
topology: tpu7x:2x2x1
jax: 0.10.0
libtpu: 0.0.40
codegen_flags: <defaults>
</compile_context>

<pallas_src>
import numpy as np

import jax
import jax.numpy as jnp
from jax.experimental import pallas as pl


def _conv_matmul_bias_relu_kernel(x_ref, a_ref, b_ref, o_ref):
    """Fused conv-as-matmul + bias + ReLU.

    x_ref: (N, H*W*Cin)         lane-dense packed-NHWC input   (8, 128)
    a_ref: (H*W*Cin, H*W*Cout)  Toeplitz conv matrix           (128, 128)
    b_ref: (1, H*W*Cout)        per-lane bias (bias tiled over pixels)
    o_ref: (N, H*W*Cout)        lane-dense packed-NHWC output  (8, 128)
    """
    acc = jnp.dot(x_ref[...], a_ref[...], preferred_element_type=jnp.float32)
    # Single full (unmasked) store of the whole output block.
    o_ref[...] = jnp.maximum(acc + b_ref[...], 0.0).astype(o_ref.dtype)


def conv2d_relu(x, weight, bias):
    """x: (N, Cin, H, W) NCHW; weight: (Cout, Cin, KH, KW); bias: (Cout,).

    Returns ReLU(Conv2d(x)) in NCHW, matching the PyTorch module
    (stride=1, padding=0 only).
    """
    n, cin, h, w = x.shape
    cout, _, kh, kw = weight.shape
    oh, ow = h - kh + 1, w - kw + 1
    pin = h * w * cin      # packed input lane width   (= 128 at spec shape)
    pout = h * w * cout    # packed output lane width  (= 128 at spec shape)

    # ---- tiny wrapper-side layout prep (one scatter + transposes) ----
    # Lane-dense packed-NHWC input: x_packed[n, (h*W + w)*Cin + ci]
    x_packed = jnp.transpose(x, (0, 2, 3, 1)).reshape(n, pin).astype(jnp.float32)

    # Sparse Toeplitz conv matrix A[p, q]:
    #   p = ((oh+i)*W + (ow+j))*Cin + ci   (input pixel/channel lane)
    #   q = (oh*W + ow)*Cout + co          (output pixel/channel lane, full HxW space)
    #   A[p, q] = weight[co, ci, i, j] for valid output pixels; 0 elsewhere.
    p_idx, q_idx, co_i, ci_i, ki_i, kj_i = [], [], [], [], [], []
    for yy in range(oh):
        for xx in range(ow):
            for i in range(kh):
                for j in range(kw):
                    for ci in range(cin):
                        for co in range(cout):
                            p_idx.append(((yy + i) * w + (xx + j)) * cin + ci)
                            q_idx.append((yy * w + xx) * cout + co)
                            co_i.append(co)
                            ci_i.append(ci)
                            ki_i.append(i)
                            kj_i.append(j)
    vals = weight.astype(jnp.float32)[
        np.asarray(co_i), np.asarray(ci_i), np.asarray(ki_i), np.asarray(kj_i)]
    a = jnp.zeros((pin, pout), jnp.float32).at[
        np.asarray(p_idx), np.asarray(q_idx)].set(vals)

    # Bias broadcast over pixels so it is a plain per-lane add in the kernel.
    b_packed = jnp.tile(bias.astype(jnp.float32), h * w).reshape(1, pout)

    out = pl.pallas_call(
        _conv_matmul_bias_relu_kernel,
        out_shape=jax.ShapeDtypeStruct((n, pout), jnp.float32),
        in_specs=[
            pl.BlockSpec((n, pin), lambda: (0, 0)),
            pl.BlockSpec((pin, pout), lambda: (0, 0)),
            pl.BlockSpec((1, pout), lambda: (0, 0)),
        ],
        out_specs=pl.BlockSpec((n, pout), lambda: (0, 0)),
        cost_estimate=pl.CostEstimate(
            flops=2 * n * pin * pout,
            transcendentals=0,
            bytes_accessed=4 * (n * pin + pin * pout + pout + n * pout),
        ),
    )(x_packed, a, b_packed)

    # Crop the valid OHxOW window and return NCHW (PyTorch module semantics).
    y = out.reshape(n, h, w, cout)[:, :oh, :ow, :]
    return jnp.transpose(y, (0, 3, 1, 2))


if __name__ == "__main__":
    key = jax.random.PRNGKey(0)
    kx, kw_, kb = jax.random.split(key, 3)

    # Input matching the PyTorch module: x = torch.randn(8, 8, 4, 4)
    x = jax.random.normal(kx, (8, 8, 4, 4), dtype=jnp.float32)

    # Conv2d(8, 8, 3) parameters, deterministic init
    fan_in = 8 * 3 * 3
    bound = 1.0 / (fan_in ** 0.5)
    weight = jax.random.uniform(kw_, (8, 8, 3, 3), jnp.float32, -bound, bound)
    bias = jax.random.uniform(kb, (8,), jnp.float32, -bound, bound)

    fwd = jax.jit(conv2d_relu)
    y = fwd(x, weight, bias)
    jax.block_until_ready(y)

    # Sanity check against XLA's conv + bias + ReLU
    ref = jax.lax.conv_general_dilated(
        x, weight, window_strides=(1, 1), padding="VALID",
        dimension_numbers=("NCHW", "OIHW", "NCHW"))
    ref = jnp.maximum(ref + bias.reshape(1, 8, 1, 1), 0.0)
    assert y.shape == (8, 8, 2, 2)
    assert jnp.allclose(y, ref, atol=1e-4, rtol=1e-4)

    print("KERNEL_OK")
</pallas_src>

<mosaic_0001>
module attributes {stable_mosaic.version = 11 : i64} {
  func.func @_conv_matmul_bias_relu_kernel(%arg0: memref<8x128xf32, #tpu.memory_space<vmem>>, %arg1: memref<128x128xf32, #tpu.memory_space<vmem>>, %arg2: memref<1x128xf32, #tpu.memory_space<vmem>>, %arg3: memref<8x128xf32, #tpu.memory_space<vmem>>) attributes {dimension_semantics = [], scalar_prefetch = 0 : i64, scratch_operands = 0 : i64, tpu.core_type = #tpu.core_type<tc>} {
    %c0 = arith.constant 0 : index
    %c0_0 = arith.constant 0 : index
    %0 = vector.load %arg0[%c0, %c0_0] : memref<8x128xf32, #tpu.memory_space<vmem>>, vector<8x128xf32>
    %c0_1 = arith.constant 0 : index
    %c0_2 = arith.constant 0 : index
    %1 = vector.load %arg1[%c0_1, %c0_2] : memref<128x128xf32, #tpu.memory_space<vmem>>, vector<128x128xf32>
    %cst = arith.constant dense<0.000000e+00> : vector<8x128xf32>
    %2 = tpu.matmul %0, %1, %cst {dimension_numbers = #tpu.dot_dimension_numbers<[1], [0], [0], [1], [0, 0, 1, 1], [], []>} : vector<8x128xf32>, vector<128x128xf32>, vector<8x128xf32> -> vector<8x128xf32>
    %c0_3 = arith.constant 0 : index
    %c0_4 = arith.constant 0 : index
    %3 = vector.load %arg2[%c0_3, %c0_4] : memref<1x128xf32, #tpu.memory_space<vmem>>, vector<1x128xf32>
    %4 = vector.broadcast %3 : vector<1x128xf32> to vector<8x128xf32>
    %5 = arith.addf %2, %4 : vector<8x128xf32>
    %cst_5 = arith.constant 0.000000e+00 : f32
    %6 = vector.broadcast %cst_5 : f32 to vector<8x128xf32>
    %7 = arith.maximumf %5, %6 : vector<8x128xf32>
    %c0_6 = arith.constant 0 : index
    %c0_7 = arith.constant 0 : index
    %8 = vector.load %arg3[%c0_6, %c0_7] : memref<8x128xf32, #tpu.memory_space<vmem>>, vector<8x128xf32>
    tpu.vector_store %arg3[%c0_6, %c0_7], %7 {strides = array<i32>} : memref<8x128xf32, #tpu.memory_space<vmem>>, vector<8x128xf32>,
    return
  }
}

</mosaic_0001>

<llo_original>
// kernel: tile.8
$region0: #{tile.8}
  #allocation0 [shape = 's32[1]{0}', space=sflag, size = 0x4, scoped, tag = 'scoped memory for tile.8']
  %s0 = inlined_call_operand.vmem [shape: f32[8], index: 0, kind: input, shape index: {}]
  %s1 = inlined_call_operand.vmem [shape: f32[16,8], index: 1, kind: output, shape index: {}]
  // Predicated region
  $region2: #{tile.8} parent=0 // pred_check
    _
  $region3: #{tile.8} parent=0 // pred_check_branch
    %3 = sbr.rel (0) target = $region5
  $region4: #{tile.8} parent=0 // pred_region
    _
  $region5: #{tile.8} parent=0 // pred_fallthru
    _
  %v4 = vld [vmem:[%s0] ss:$0 sm:$0xff]
  %5 = vst [vmem:[%s1] sm:$0xff] %v4
  %s6 = scalar_lea.vmem %s1, 8
  %7 = vst [vmem:[%s6] sm:$0xff] %v4

// kernel: tile.9
$region0: #{tile.9}
  %s0 = inlined_call_operand.vmem [shape: f32[16,8], index: 0, kind: input, shape index: {}]
  %s1 = inlined_call_operand.vmem [shape: f32[1,128], index: 1, kind: output, shape index: {}]
  $region1: #{tile.9} parent=0
    #allocation0 [shape = 'u8[4096]{0}', space=vmem, size = 0x1000, scoped, tag = 'scoped mem for output reshape']
    %v2 = vld [vmem:[%s0] sm:$0x1]
    %vm3 = vcmask 64512
    %4 = vst.msk [vmem:[#allocation0] sm:$0x1] %vm3, %v2
    %s5 = scalar_lea.vmem %s0, 15
    %v6 = vld [vmem:[%s5] sm:$0x1]
    %7 = vrot.lane.b32.xlu0 %v6, 120
    %v8 = vpop.permute.xlu0 %7
    %vm9 = vcmask 1048512
    %10 = vst.msk [vmem:[#allocation0] sm:$0x1] %vm9, %v8
    %s11 = scalar_lea.vmem %s0, 14
    %v12 = vld [vmem:[%s11] sm:$0x1]
    %13 = vrot.lane.b32.xlu0 %v12, 112
    %v14 = vpop.permute.xlu0 %13
    %vm15 = vcmask 982912
    %16 = vst.msk [vmem:[#allocation0] sm:$0x1] %vm15, %v14
    %s17 = scalar_lea.vmem %s0, 13
    %v18 = vld [vmem:[%s17] sm:$0x1]
    %19 = vrot.lane.b32.xlu0 %v18, 104
    %v20 = vpop.permute.xlu0 %19
    %vm21 = vcmask 917312
    %22 = vst.msk [vmem:[#allocation0] sm:$0x1] %vm21, %v20
    %s23 = scalar_lea.vmem %s0, 12
    %v24 = vld [vmem:[%s23] sm:$0x1]
    %25 = vrot.lane.b32.xlu0 %v24, 96
    %v26 = vpop.permute.xlu0 %25
    %vm27 = vcmask 851712
    %28 = vst.msk [vmem:[#allocation0] sm:$0x1] %vm27, %v26
    %s29 = scalar_lea.vmem %s0, 11
    %v30 = vld [vmem:[%s29] sm:$0x1]
    %31 = vrot.lane.b32.xlu0 %v30, 88
    %v32 = vpop.permute.xlu0 %31
    %vm33 = vcmask 786112
    %34 = vst.msk [vmem:[#allocation0] sm:$0x1] %vm33, %v32
    %s35 = scalar_lea.vmem %s0, 10
    %v36 = vld [vmem:[%s35] sm:$0x1]
    %37 = vrot.lane.b32.xlu0 %v36, 80
    %v38 = vpop.permute.xlu0 %37
    %vm39 = vcmask 720512
    %40 = vst.msk [vmem:[#allocation0] sm:$0x1] %vm39, %v38
    %s41 = scalar_lea.vmem %s0, 9
    %v42 = vld [vmem:[%s41] sm:$0x1]
    %43 = vrot.lane.b32.xlu0 %v42, 72
    %v44 = vpop.permute.xlu0 %43
    %vm45 = vcmask 654912
    %46 = vst.msk [vmem:[#allocation0] sm:$0x1] %vm45, %v44
    %s47 = scalar_lea.vmem %s0, 8
    %v48 = vld [vmem:[%s47] sm:$0x1]
    %49 = vrot.lane.b32.xlu0 %v48, 64
    %v50 = vpop.permute.xlu0 %49
    %vm51 = vcmask 589312
    %52 = vst.msk [vmem:[#allocation0] sm:$0x1] %vm51, %v50
    %s53 = scalar_lea.vmem %s0, 7
    %v54 = vld [vmem:[%s53] sm:$0x1]
    %55 = vrot.lane.b32.xlu0 %v54, 56
    %v56 = vpop.permute.xlu0 %55
    %vm57 = vcmask 523712
    %58 = vst.msk [vmem:[#allocation0] sm:$0x1] %vm57, %v56
    %s59 = scalar_lea.vmem %s0, 6
    %v60 = vld [vmem:[%s59] sm:$0x1]
    %61 = vrot.lane.b32.xlu0 %v60, 48
    %v62 = vpop.permute.xlu0 %61
    %vm63 = vcmask 458112
    %64 = vst.msk [vmem:[#allocation0] sm:$0x1] %vm63, %v62
    %s65 = scalar_lea.vmem %s0, 5
    %v66 = vld [vmem:[%s65] sm:$0x1]
    %67 = vrot.lane.b32.xlu0 %v66, 40
    %v68 = vpop.permute.xlu0 %67
    %vm69 = vcmask 392512
    %70 = vst.msk [vmem:[#allocation0] sm:$0x1] %vm69, %v68
    %s71 = scalar_lea.vmem %s0, 4
    %v72 = vld [vmem:[%s71] sm:$0x1]
    %73 = vrot.lane.b32.xlu0 %v72, 32
    %v74 = vpop.permute.xlu0 %73
    %vm75 = vcmask 326912
    %76 = vst.msk [vmem:[#allocation0] sm:$0x1] %vm75, %v74
    %s77 = scalar_lea.vmem %s0, 3
    %v78 = vld [vmem:[%s77] sm:$0x1]
    %79 = vrot.lane.b32.xlu0 %v78, 24
    %v80 = vpop.permute.xlu0 %79
    %vm81 = vcmask 261312
    %82 = vst.msk [vmem:[#allocation0] sm:$0x1] %vm81, %v80
    %s83 = scalar_lea.vmem %s0, 2
    %v84 = vld [vmem:[%s83] sm:$0x1]
    %85 = vrot.lane.b32.xlu0 %v84, 16
    %v86 = vpop.permute.xlu0 %85
    %vm87 = vcmask 195712
    %88 = vst.msk [vmem:[#allocation0] sm:$0x1] %vm87, %v86
    %s89 = scalar_lea.vmem %s0, 1
    %v90 = vld [vmem:[%s89] sm:$0x1]
    %91 = vrot.lane.b32.xlu0 %v90, 8
    %v92 = vpop.permute.xlu0 %91
    %vm93 = vcmask 130112
    %94 = vst.msk [vmem:[#allocation0] sm:$0x1] %vm93, %v92
    %s96 = sshllo.u32 0, 1
    %v98 = vld [vmem:[#allocation0] sm:%s96]
    %s99 = sshllo.u32 0, 1
    %100 = vst [vmem:[%s1] sm:%s99] %v98

// kernel: conv2d_relu.1
$region0: #{conv2d_relu.1}
  #allocation0 [shape = 'u32[]', space=smem, size = 0x4, offset = 0x4, fixed_abs, tag = 'smem constant byte address 0x4 - core index']
  #allocation1 [shape = 'u32[144,128]{1,0:T(1,128)}', space=vmem, size = 0x12000, scoped, tag = 'internal scratch']
  %s0 = inlined_call_operand.vmem [shape: f32[8,128], index: 0, kind: input, shape index: {}]
  %s1 = inlined_call_operand.vmem [shape: f32[128,128], index: 1, kind: input, shape index: {}]
  %s2 = inlined_call_operand.vmem [shape: f32[1,128], index: 2, kind: input, shape index: {}]
  %s3 = inlined_call_operand.vmem [shape: f32[8,128], index: 3, kind: output, shape index: {}]
  %s4 = sld [smem:[#allocation0]]
  $region22: #{conv2d_relu.1} parent=0
    _
  %s6 = ssub.s32 1, %s4
  %s7 = scalar_select 0, %s6, %s4
  // Predicated region
  $region2: #{conv2d_relu.1} parent=0 // pred_check
    _
  $region3: #{conv2d_relu.1} parent=0 // pred_check_branch
    %9 = sbr.rel (0) target = $region5
  $region4: #{conv2d_relu.1} parent=0 // pred_region
    _
  $region5: #{conv2d_relu.1} parent=0 // pred_fallthru
    _
  // Predicated region
  $region6: #{conv2d_relu.1} parent=0 // pred_check
    _
  $region7: #{conv2d_relu.1} parent=0 // pred_check_branch
    %11 = sbr.rel (0) target = $region9
  $region8: #{conv2d_relu.1} parent=0 // pred_region
    _
  $region9: #{conv2d_relu.1} parent=0 // pred_fallthru
    _
  // Predicated region
  $region10: #{conv2d_relu.1} parent=0 // pred_check
    _
  $region11: #{conv2d_relu.1} parent=0 // pred_check_branch
    %13 = sbr.rel (0) target = $region13
  $region12: #{conv2d_relu.1} parent=0 // pred_region
    _
  $region13: #{conv2d_relu.1} parent=0 // pred_fallthru
    _
  %v14 = vld [vmem:[%s0] sm:$0xff]
  %v15 = vld [vmem:[%s1] sm:$0xff]
  %v16 = vld [vmem:[%s1 + $0x8] sm:$0xff]
  %v17 = vld [vmem:[%s1 + $0x10] sm:$0xff]
  %v18 = vld [vmem:[%s1 + $0x18] sm:$0xff]
  %v19 = vld [vmem:[%s1 + $0x20] sm:$0xff]
  %v20 = vld [vmem:[%s1 + $0x28] sm:$0xff]
  %v21 = vld [vmem:[%s1 + $0x30] sm:$0xff]
  %v22 = vld [vmem:[%s1 + $0x38] sm:$0xff]
  %v23 = vld [vmem:[%s1 + $0x40] sm:$0xff]
  %v24 = vld [vmem:[%s1 + $0x48] sm:$0xff]
  %v25 = vld [vmem:[%s1 + $0x50] sm:$0xff]
  %v26 = vld [vmem:[%s1 + $0x58] sm:$0xff]
  %v27 = vld [vmem:[%s1 + $0x60] sm:$0xff]
  %v28 = vld [vmem:[%s1 + $0x68] sm:$0xff]
  %v29 = vld [vmem:[%s1 + $0x70] sm:$0xff]
  %v30 = vld [vmem:[%s1 + $0x78] sm:$0xff]
  %v31 = vld [vmem:[%s2] sm:$0x1]
  %v33 = vlaneseq
  %v34 = vshrl.u32 %v33, 7
  %v35 = vsub.s32 0, %v34
  %v36 = vrot.slane %v31, %v35
  %38 = vmatprep.subr.mxu0 0.0
  %39 = vmatpush1.msra.mxu0 %v15
  %40 = vmatprep.subr.mxu0 0.0
  %41 = vmatpush1.msra.mxu0 %v16
  %42 = vmatprep.subr.mxu0 0.0
  %43 = vmatpush1.msra.mxu0 %v17
  %44 = vmatprep.subr.mxu0 0.0
  %45 = vmatpush1.msra.mxu0 %v18
  %46 = vmatprep.subr.mxu0 0.0
  %47 = vmatpush1.msra.mxu0 %v19
  %48 = vmatprep.subr.mxu0 0.0
  %49 = vmatpush1.msra.mxu0 %v20
  %50 = vmatprep.subr.mxu0 0.0
  %51 = vmatpush1.msra.mxu0 %v21
  %52 = vmatprep.subr.mxu0 0.0
  %53 = vmatpush1.msra.mxu0 %v22
  %54 = vmatprep.subr.mxu0 0.0
  %55 = vmatpush1.msra.mxu0 %v23
  %56 = vmatprep.subr.mxu0 0.0
  %57 = vmatpush1.msra.mxu0 %v24
  %58 = vmatprep.subr.mxu0 0.0
  %59 = vmatpush1.msra.mxu0 %v25
  %60 = vmatprep.subr.mxu0 0.0
  %61 = vmatpush1.msra.mxu0 %v26
  %62 = vmatprep.subr.mxu0 0.0
  %63 = vmatpush1.msra.mxu0 %v27
  %64 = vmatprep.subr.mxu0 0.0
  %65 = vmatpush1.msra.mxu0 %v28
  %66 = vmatprep.subr.mxu0 0.0
  %67 = vmatpush1.msra.mxu0 %v29
  %68 = vmatprep.subr.mxu0 0.0
  %69 = vmatpush1.msra.mxu0 %v30
  %70 = vmatprep.subr.mxu0 0.0
  %71 = vmatpush1.msra.mxu0 0.0
  %72 = vmatprep.subr.mxu0 0.0
  %73 = vmatpush1.msra.mxu0 0.0
  %74 = vmatprep.subr.mxu0 0.0
  %75 = vmatpush1.msra.mxu0 0.0
  %76 = vmatprep.subr.mxu0 0.0
  %77 = vmatpush1.msra.mxu0 0.0
  %78 = vmatprep.subr.mxu0 0.0
  %79 = vmatpush1.msra.mxu0 0.0
  %80 = vmatprep.subr.mxu0 0.0
  %81 = vmatpush1.msra.mxu0 0.0
  %82 = vmatprep.subr.mxu0 0.0
  %83 = vmatpush1.msra.mxu0 0.0
  %84 = vmatprep.subr.mxu0 0.0
  %85 = vmatpush1.msra.mxu0 0.0
  %86 = vmatprep.subr.mxu0 0.0
  %87 = vmatpush1.msra.mxu0 0.0
  %88 = vmatprep.subr.mxu0 0.0
  %89 = vmatpush1.msra.mxu0 0.0
  %90 = vmatprep.subr.mxu0 0.0
  %91 = vmatpush1.msra.mxu0 0.0
  %92 = vmatprep.subr.mxu0 0.0
  %93 = vmatpush1.msra.mxu0 0.0
  %94 = vmatprep.subr.mxu0 0.0
  %95 = vmatpush1.msra.mxu0 0.0
  %96 = vmatprep.subr.mxu0 0.0
  %97 = vmatpush1.msra.mxu0 0.0
  %98 = vmatprep.subr.mxu0 0.0
  %99 = vmatpush1.msra.mxu0 0.0
  %100 = vmatprep.subr.mxu0 0.0
  %101 = vmatpush1.msra.mxu0 0.0
  %102 = vmatprep.mubr.f32.mxu0 0.0
  %103 = vmatmul.mubr.f32.gmra.mrb[0].mxu0 %v14
  %v104 = vpop.f32.mrb[0].mxu0
  %v105 = vadd.f32 %v36, %v104
  %v106 = vpop.f32.mrb[0].mxu0
  %107 = vdwg.mxu0
  %v108 = vmax.f32 %v105, 0.0
  %109 = vst [vmem:[%s3] sm:$0xff] %v108
  // Predicated region
  $region14: #{conv2d_relu.1} parent=0 // pred_check
    _
  $region15: #{conv2d_relu.1} parent=0 // pred_check_branch
    %111 = sbr.rel (0) target = $region17
  $region16: #{conv2d_relu.1} parent=0 // pred_region
    _
  $region17: #{conv2d_relu.1} parent=0 // pred_fallthru
    _
  // Predicated region
  $region18: #{conv2d_relu.1} parent=0 // pred_check
    _
  $region19: #{conv2d_relu.1} parent=0 // pred_check_branch
    %113 = sbr.rel (0) target = $region21
  $region20: #{conv2d_relu.1} parent=0 // pred_region
    _
  $region21: #{conv2d_relu.1} parent=0 // pred_fallthru
    _

</llo_original>
